<compile_context>
chip_gen: v6e
topology: v6e:2x2x1
jax: 0.10.0
libtpu: 0.0.40
codegen_flags: <defaults>
</compile_context>

<pallas_src>
import functools

import jax
import jax.numpy as jnp
from jax.experimental import pallas as pl
from jax.experimental.pallas import tpu as pltpu

_LANES = 128
_VMEM_LIMIT = 32 << 20          # requested scoped VMEM (safe on v5e/v6e/v7x)
_TILE_BUDGET = 20 << 20         # per-step VMEM budget used by the tile picker


def _reduce_rows(x, acc_rows):
    """Sum a [T, 128] tile down to [acc_rows, 128] with plain vreg adds."""
    t = x.shape[0]
    if t == acc_rows:
        return x
    return jnp.sum(x.reshape(t // acc_rows, acc_rows, x.shape[1]), axis=0)


def _dice_ce_kernel(pred_ref, cls_ref, ce_ref, inter_ref, union_ref,
                    *, C, acc_rows, needs_mask):
    t = pl.program_id(2)

    @pl.when(t == 0)
    def _():
        ce_ref[...] = jnp.zeros_like(ce_ref)
        inter_ref[...] = jnp.zeros_like(inter_ref)
        union_ref[...] = jnp.zeros_like(union_ref)

    cls = cls_ref[0].astype(jnp.int32)                       # [T, 128]
    valid = (cls >= 0) if needs_mask else None

    # Pass 1: running max over classes (only `m` stays live).
    m = pred_ref[0, 0].astype(jnp.float32)
    for c in range(1, C):
        m = jnp.maximum(m, pred_ref[0, c].astype(jnp.float32))

    # Pass 2: exps, softmax denominator and picked (shifted) logit in one
    # sweep.  Only the exps list is kept live.
    # TODO(synk): for large class counts (C >= ~16) switch this unroll to a
    # lax.fori_loop to keep live temporaries bounded.
    exps = []
    s = None
    picked_shift = None
    for c in range(C):
        l = pred_ref[0, c].astype(jnp.float32)
        e = jnp.exp(l - m)                                   # EUP
        exps.append(e)
        s = e if s is None else s + e
        p = jnp.where(cls == c, l - m, 0.0)
        picked_shift = p if picked_shift is None else picked_shift + p

    # Cross-entropy term: lse - picked_logit == log(s) - (l_target - m).
    ce_term = jnp.log(s) - picked_shift
    if needs_mask:
        ce_term = jnp.where(valid, ce_term, 0.0)
    ce_ref[0] += _reduce_rows(ce_term, acc_rows)

    # Approx reciprocal on the EUP slot + one Newton step (~f32 accuracy).
    inv_s = pl.reciprocal(s, approx=True)
    inv_s = inv_s * (2.0 - s * inv_s)

    for c in range(C):
        prob = exps[c] * inv_s
        if needs_mask:
            prob = jnp.where(valid, prob, 0.0)
        hit = cls == c
        inter_c = jnp.where(hit, prob, 0.0)                  # probs * onehot
        union_c = jnp.where(hit, prob + 1.0, prob)           # probs + onehot
        inter_ref[0, c] += _reduce_rows(inter_c, acc_rows)
        union_ref[0, c] += _reduce_rows(union_c, acc_rows)


def _pick_tile_rows(n_rows, per_row_bytes, budget_bytes=_TILE_BUDGET):
    """Pick tile rows T (and a possibly padded row count R) so that the total
    per-step VMEM footprint stays under budget_bytes and the (8,128) block
    rule is respected."""
    max_rows = max(8, (budget_bytes // per_row_bytes) // 8 * 8)
    if n_rows <= max_rows:
        return n_rows, n_rows                 # full extent block (always legal)
    for t in range(max_rows, 7, -8):          # aligned divisor of n_rows
        if n_rows % t == 0:
            return t, n_rows
    t = max_rows                              # no divisor: pad rows up instead
    r_pad = -(-n_rows // t) * t
    return t, r_pad


def dice_ce_loss(pred, target, ce_weight=0.5, smooth=1e-5):
    """pred: logits [B, C, H, W]; target: one-hot [B, C, H, W]. Returns scalar."""
    B, C, H, W = pred.shape
    HW = H * W

    # Class indices instead of the one-hot: 1 B/pixel of target DMA (int8).
    cls_dtype = jnp.int8 if C <= 127 else jnp.int32
    cls = jnp.argmax(target, axis=1).astype(cls_dtype).reshape(B, HW)
    pred_flat = pred.reshape(B, C, HW)         # keep caller dtype (bf16 ok)

    r0 = -(-HW // _LANES)                      # rows of 128 pixels
    per_row_bytes = _LANES * (2 * C * pred.dtype.itemsize          # pred dbl-buf
                              + 2 * jnp.dtype(cls_dtype).itemsize  # cls dbl-buf
                              + (C + 8) * 4)                       # f32 temps
    T, R = _pick_tile_rows(r0, per_row_bytes)
    hw_pad = R * _LANES
    needs_mask = hw_pad != HW
    if needs_mask:
        pad = hw_pad - HW
        pred_flat = jnp.pad(pred_flat, ((0, 0), (0, 0), (0, pad)))
        cls = jnp.pad(cls, ((0, 0), (0, pad)), constant_values=-1)
    pred4 = pred_flat.reshape(B, C, R, _LANES)          # [B, C, R, 128]
    cls3 = cls.reshape(B, R, _LANES)                    # [B, R, 128] int8

    num_t = R // T
    acc_rows = 8 if T % 8 == 0 else T                   # vreg-sized partials

    # v7x has 2 TensorCores: if the batch axis alone can't feed both, shard
    # the spatial tiles into S parallel groups (per-shard partials summed in
    # the wrapper).  Degenerates to S = 1 otherwise.
    S = 2 if (B < 2 and num_t >= 2 and num_t % 2 == 0) else 1
    tps = num_t // S                                     # tiles per shard
    BS = B * S

    kernel = functools.partial(_dice_ce_kernel, C=C, acc_rows=acc_rows,
                               needs_mask=needs_mask)

    ce_p, inter_p, union_p = pl.pallas_call(
        kernel,
        out_shape=(
            jax.ShapeDtypeStruct((BS, acc_rows, _LANES), jnp.float32),
            jax.ShapeDtypeStruct((BS, C, acc_rows, _LANES), jnp.float32),
            jax.ShapeDtypeStruct((BS, C, acc_rows, _LANES), jnp.float32),
        ),
        grid_spec=pltpu.PrefetchScalarGridSpec(
            num_scalar_prefetch=0,
            grid=(B, S, tps),
            in_specs=[
                pl.BlockSpec((1, C, T, _LANES),
                             lambda b, s, t: (b, 0, s * tps + t, 0)),
                pl.BlockSpec((1, T, _LANES),
                             lambda b, s, t: (b, s * tps + t, 0)),
            ],
            out_specs=[
                pl.BlockSpec((1, acc_rows, _LANES),
                             lambda b, s, t: (b * S + s, 0, 0)),
                pl.BlockSpec((1, C, acc_rows, _LANES),
                             lambda b, s, t: (b * S + s, 0, 0, 0)),
                pl.BlockSpec((1, C, acc_rows, _LANES),
                             lambda b, s, t: (b * S + s, 0, 0, 0)),
            ],
        ),
        compiler_params=pltpu.CompilerParams(
            dimension_semantics=("parallel", "parallel", "arbitrary"),
            vmem_limit_bytes=_VMEM_LIMIT),
    )(pred4, cls3)

    # Tiny final reductions + loss combine (cheap, done in XLA).
    inter = jnp.sum(inter_p.reshape(B, S, C, -1), axis=(1, 3))   # [B, C]
    union = jnp.sum(union_p.reshape(B, S, C, -1), axis=(1, 3))   # [B, C]
    dice_score = (2.0 * inter + smooth) / (union + smooth)
    dice_loss = 1.0 - jnp.mean(dice_score)
    ce_loss = jnp.sum(ce_p) / jnp.float32(B * HW)
    return dice_loss + ce_weight * ce_loss


def _reference(pred, target, ce_weight=0.5, smooth=1e-5):
    # Pure-JAX reference mirroring the PyTorch module.
    probs = jax.nn.softmax(pred, axis=1)
    inter = jnp.sum(probs * target, axis=(2, 3))
    union = jnp.sum(probs + target, axis=(2, 3))
    dice_score = (2 * inter + smooth) / (union + smooth)
    dice = 1.0 - dice_score.mean()

    tgt_idx = jnp.argmax(target, axis=1)
    logp = jax.nn.log_softmax(pred, axis=1)
    picked = jnp.take_along_axis(logp, tgt_idx[:, None], axis=1)[:, 0]
    ce = -picked.mean()
    return dice + ce_weight * ce


if __name__ == "__main__":
    key = jax.random.PRNGKey(0)
    B, C, H, W = 2, 4, 16, 16

    k_pred, k_cls = jax.random.split(key)
    pred = jax.random.normal(k_pred, (B, C, H, W), dtype=jnp.float32)
    cls = jax.random.randint(k_cls, (B, H, W), 0, C)
    target = jax.nn.one_hot(cls, C, axis=1, dtype=jnp.float32)  # [B, C, H, W]

    loss = jax.block_until_ready(dice_ce_loss(pred, target))
    ref = _reference(pred, target)
    assert jnp.allclose(loss, ref, atol=1e-5, rtol=1e-5), (loss, ref)

    print("KERNEL_OK")
</pallas_src>

<mosaic_0001>
module attributes {stable_mosaic.version = 11 : i64} {
  func.func @_dice_ce_kernel(%arg0: i32, %arg1: i32, %arg2: i32, %arg3: memref<1x4x2x128xf32, #tpu.memory_space<vmem>>, %arg4: memref<1x2x128xi8, #tpu.memory_space<vmem>>, %arg5: memref<1x2x128xf32, #tpu.memory_space<vmem>>, %arg6: memref<1x4x2x128xf32, #tpu.memory_space<vmem>>, %arg7: memref<1x4x2x128xf32, #tpu.memory_space<vmem>>) attributes {dimension_semantics = [#tpu.dimension_semantics<parallel>, #tpu.dimension_semantics<parallel>, #tpu.dimension_semantics<arbitrary>], iteration_bounds = array<i64: 2, 1, 1>, scalar_prefetch = 0 : i64, scratch_operands = 0 : i64, tpu.core_type = #tpu.core_type<tc>, window_params = [{transform_indices = @transform_0, window_bounds = array<i64: 1, 4, 2, 128>}, {transform_indices = @transform_1, window_bounds = array<i64: 1, 2, 128>}, {transform_indices = @transform_2, window_bounds = array<i64: 1, 2, 128>}, {transform_indices = @transform_3, window_bounds = array<i64: 1, 4, 2, 128>}, {transform_indices = @transform_4, window_bounds = array<i64: 1, 4, 2, 128>}]} {
    %c0_i32 = arith.constant 0 : i32
    %0 = arith.cmpi eq, %arg2, %c0_i32 : i32
    %1 = arith.extui %0 : i1 to i32
    %c0_i32_0 = arith.constant 0 : i32
    %2 = arith.cmpi ne, %1, %c0_i32_0 : i32
    scf.if %2 {
      %cst_119 = arith.constant 0.000000e+00 : f32
      %152 = vector.broadcast %cst_119 : f32 to vector<1x2x128xf32>
      %c0_120 = arith.constant 0 : index
      %c0_121 = arith.constant 0 : index
      %c0_122 = arith.constant 0 : index
      %153 = vector.load %arg5[%c0_120, %c0_121, %c0_122] : memref<1x2x128xf32, #tpu.memory_space<vmem>>, vector<1x2x128xf32>
      tpu.vector_store %arg5[%c0_120, %c0_121, %c0_122], %152 {strides = array<i32>} : memref<1x2x128xf32, #tpu.memory_space<vmem>>, vector<1x2x128xf32>,
      %cst_123 = arith.constant 0.000000e+00 : f32
      %154 = vector.broadcast %cst_123 : f32 to vector<1x4x2x128xf32>
      %c0_124 = arith.constant 0 : index
      %c0_125 = arith.constant 0 : index
      %c0_126 = arith.constant 0 : index
      %c0_127 = arith.constant 0 : index
      %155 = vector.load %arg6[%c0_124, %c0_125, %c0_126, %c0_127] : memref<1x4x2x128xf32, #tpu.memory_space<vmem>>, vector<1x4x2x128xf32>
      tpu.vector_store %arg6[%c0_124, %c0_125, %c0_126, %c0_127], %154 {strides = array<i32>} : memref<1x4x2x128xf32, #tpu.memory_space<vmem>>, vector<1x4x2x128xf32>,
      %cst_128 = arith.constant 0.000000e+00 : f32
      %156 = vector.broadcast %cst_128 : f32 to vector<1x4x2x128xf32>
      %c0_129 = arith.constant 0 : index
      %c0_130 = arith.constant 0 : index
      %c0_131 = arith.constant 0 : index
      %c0_132 = arith.constant 0 : index
      %157 = vector.load %arg7[%c0_129, %c0_130, %c0_131, %c0_132] : memref<1x4x2x128xf32, #tpu.memory_space<vmem>>, vector<1x4x2x128xf32>
      tpu.vector_store %arg7[%c0_129, %c0_130, %c0_131, %c0_132], %156 {strides = array<i32>} : memref<1x4x2x128xf32, #tpu.memory_space<vmem>>, vector<1x4x2x128xf32>,
    } else {
    }
    %c0 = arith.constant 0 : index
    %c0_1 = arith.constant 0 : index
    %c0_2 = arith.constant 0 : index
    %3 = vector.load %arg4[%c0, %c0_1, %c0_2] : memref<1x2x128xi8, #tpu.memory_space<vmem>>, vector<1x2x128xi8>
    %4 = vector.shape_cast %3 : vector<1x2x128xi8> to vector<2x128xi8>
    %5 = arith.extsi %4 : vector<2x128xi8> to vector<2x128xi32>
    %c0_3 = arith.constant 0 : index
    %c0_4 = arith.constant 0 : index
    %c0_5 = arith.constant 0 : index
    %c0_6 = arith.constant 0 : index
    %6 = vector.load %arg3[%c0_3, %c0_4, %c0_5, %c0_6] : memref<1x4x2x128xf32, #tpu.memory_space<vmem>>, vector<1x1x2x128xf32>
    %7 = vector.shape_cast %6 : vector<1x1x2x128xf32> to vector<2x128xf32>
    %c0_7 = arith.constant 0 : index
    %c1 = arith.constant 1 : index
    %c0_8 = arith.constant 0 : index
    %c0_9 = arith.constant 0 : index
    %8 = vector.load %arg3[%c0_7, %c1, %c0_8, %c0_9] : memref<1x4x2x128xf32, #tpu.memory_space<vmem>>, vector<1x1x2x128xf32>
    %9 = vector.shape_cast %8 : vector<1x1x2x128xf32> to vector<2x128xf32>
    %10 = arith.maximumf %7, %9 : vector<2x128xf32>
    %c0_10 = arith.constant 0 : index
    %c2 = arith.constant 2 : index
    %c0_11 = arith.constant 0 : index
    %c0_12 = arith.constant 0 : index
    %11 = vector.load %arg3[%c0_10, %c2, %c0_11, %c0_12] : memref<1x4x2x128xf32, #tpu.memory_space<vmem>>, vector<1x1x2x128xf32>
    %12 = vector.shape_cast %11 : vector<1x1x2x128xf32> to vector<2x128xf32>
    %13 = arith.maximumf %10, %12 : vector<2x128xf32>
    %c0_13 = arith.constant 0 : index
    %c3 = arith.constant 3 : index
    %c0_14 = arith.constant 0 : index
    %c0_15 = arith.constant 0 : index
    %14 = vector.load %arg3[%c0_13, %c3, %c0_14, %c0_15] : memref<1x4x2x128xf32, #tpu.memory_space<vmem>>, vector<1x1x2x128xf32>
    %15 = vector.shape_cast %14 : vector<1x1x2x128xf32> to vector<2x128xf32>
    %16 = arith.maximumf %13, %15 : vector<2x128xf32>
    %c0_16 = arith.constant 0 : index
    %c0_17 = arith.constant 0 : index
    %c0_18 = arith.constant 0 : index
    %c0_19 = arith.constant 0 : index
    %17 = vector.load %arg3[%c0_16, %c0_17, %c0_18, %c0_19] : memref<1x4x2x128xf32, #tpu.memory_space<vmem>>, vector<1x1x2x128xf32>
    %18 = vector.shape_cast %17 : vector<1x1x2x128xf32> to vector<2x128xf32>
    %19 = arith.subf %18, %16 : vector<2x128xf32>
    %20 = math.exp %19 : vector<2x128xf32>
    %c0_i32_20 = arith.constant 0 : i32
    %21 = vector.broadcast %c0_i32_20 : i32 to vector<2x128xi32>
    %22 = arith.cmpi eq, %5, %21 : vector<2x128xi32>
    %23 = arith.subf %18, %16 : vector<2x128xf32>
    %cst = arith.constant 0.000000e+00 : f32
    %24 = vector.broadcast %cst : f32 to vector<2x128xf32>
    %25 = arith.select %22, %23, %24 : vector<2x128xi1>, vector<2x128xf32>
    %c0_21 = arith.constant 0 : index
    %c1_22 = arith.constant 1 : index
    %c0_23 = arith.constant 0 : index
    %c0_24 = arith.constant 0 : index
    %26 = vector.load %arg3[%c0_21, %c1_22, %c0_23, %c0_24] : memref<1x4x2x128xf32, #tpu.memory_space<vmem>>, vector<1x1x2x128xf32>
    %27 = vector.shape_cast %26 : vector<1x1x2x128xf32> to vector<2x128xf32>
    %28 = arith.subf %27, %16 : vector<2x128xf32>
    %29 = math.exp %28 : vector<2x128xf32>
    %30 = arith.addf %20, %29 : vector<2x128xf32>
    %c1_i32 = arith.constant 1 : i32
    %31 = vector.broadcast %c1_i32 : i32 to vector<2x128xi32>
    %32 = arith.cmpi eq, %5, %31 : vector<2x128xi32>
    %33 = arith.subf %27, %16 : vector<2x128xf32>
    %cst_25 = arith.constant 0.000000e+00 : f32
    %34 = vector.broadcast %cst_25 : f32 to vector<2x128xf32>
    %35 = arith.select %32, %33, %34 : vector<2x128xi1>, vector<2x128xf32>
    %36 = arith.addf %25, %35 : vector<2x128xf32>
    %c0_26 = arith.constant 0 : index
    %c2_27 = arith.constant 2 : index
    %c0_28 = arith.constant 0 : index
    %c0_29 = arith.constant 0 : index
    %37 = vector.load %arg3[%c0_26, %c2_27, %c0_28, %c0_29] : memref<1x4x2x128xf32, #tpu.memory_space<vmem>>, vector<1x1x2x128xf32>
    %38 = vector.shape_cast %37 : vector<1x1x2x128xf32> to vector<2x128xf32>
    %39 = arith.subf %38, %16 : vector<2x128xf32>
    %40 = math.exp %39 : vector<2x128xf32>
    %41 = arith.addf %30, %40 : vector<2x128xf32>
    %c2_i32 = arith.constant 2 : i32
    %42 = vector.broadcast %c2_i32 : i32 to vector<2x128xi32>
    %43 = arith.cmpi eq, %5, %42 : vector<2x128xi32>
    %44 = arith.subf %38, %16 : vector<2x128xf32>
    %cst_30 = arith.constant 0.000000e+00 : f32
    %45 = vector.broadcast %cst_30 : f32 to vector<2x128xf32>
    %46 = arith.select %43, %44, %45 : vector<2x128xi1>, vector<2x128xf32>
    %47 = arith.addf %36, %46 : vector<2x128xf32>
    %c0_31 = arith.constant 0 : index
    %c3_32 = arith.constant 3 : index
    %c0_33 = arith.constant 0 : index
    %c0_34 = arith.constant 0 : index
    %48 = vector.load %arg3[%c0_31, %c3_32, %c0_33, %c0_34] : memref<1x4x2x128xf32, #tpu.memory_space<vmem>>, vector<1x1x2x128xf32>
    %49 = vector.shape_cast %48 : vector<1x1x2x128xf32> to vector<2x128xf32>
    %50 = arith.subf %49, %16 : vector<2x128xf32>
    %51 = math.exp %50 : vector<2x128xf32>
    %52 = arith.addf %41, %51 : vector<2x128xf32>
    %c3_i32 = arith.constant 3 : i32
    %53 = vector.broadcast %c3_i32 : i32 to vector<2x128xi32>
    %54 = arith.cmpi eq, %5, %53 : vector<2x128xi32>
    %55 = arith.subf %49, %16 : vector<2x128xf32>
    %cst_35 = arith.constant 0.000000e+00 : f32
    %56 = vector.broadcast %cst_35 : f32 to vector<2x128xf32>
    %57 = arith.select %54, %55, %56 : vector<2x128xi1>, vector<2x128xf32>
    %58 = arith.addf %47, %57 : vector<2x128xf32>
    %59 = math.log %52 : vector<2x128xf32>
    %60 = arith.subf %59, %58 : vector<2x128xf32>
    %c0_36 = arith.constant 0 : index
    %c0_37 = arith.constant 0 : index
    %c0_38 = arith.constant 0 : index
    %61 = vector.load %arg5[%c0_36, %c0_37, %c0_38] : memref<1x2x128xf32, #tpu.memory_space<vmem>>, vector<1x2x128xf32>
    %62 = vector.shape_cast %61 : vector<1x2x128xf32> to vector<2x128xf32>
    %63 = arith.addf %62, %60 : vector<2x128xf32>
    %c0_39 = arith.constant 0 : index
    %c0_40 = arith.constant 0 : index
    %c0_41 = arith.constant 0 : index
    %64 = vector.load %arg5[%c0_39, %c0_40, %c0_41] : memref<1x2x128xf32, #tpu.memory_space<vmem>>, vector<1x2x128xf32>
    %65 = vector.shape_cast %64 : vector<1x2x128xf32> to vector<2x128xf32>
    %66 = vector.shape_cast %63 : vector<2x128xf32> to vector<1x2x128xf32>
    tpu.vector_store %arg5[%c0_39, %c0_40, %c0_41], %66 {strides = array<i32>} : memref<1x2x128xf32, #tpu.memory_space<vmem>>, vector<1x2x128xf32>,
    %67 = tpu.reciprocal %52 {approx = true} : vector<2x128xf32> -> vector<2x128xf32>
    %68 = arith.mulf %52, %67 : vector<2x128xf32>
    %cst_42 = arith.constant 2.000000e+00 : f32
    %69 = vector.broadcast %cst_42 : f32 to vector<2x128xf32>
    %70 = arith.subf %69, %68 : vector<2x128xf32>
    %71 = arith.mulf %67, %70 : vector<2x128xf32>
    %72 = arith.mulf %20, %71 : vector<2x128xf32>
    %c0_i32_43 = arith.constant 0 : i32
    %73 = vector.broadcast %c0_i32_43 : i32 to vector<2x128xi32>
    %74 = arith.cmpi eq, %5, %73 : vector<2x128xi32>
    %cst_44 = arith.constant 0.000000e+00 : f32
    %75 = vector.broadcast %cst_44 : f32 to vector<2x128xf32>
    %76 = arith.select %74, %72, %75 : vector<2x128xi1>, vector<2x128xf32>
    %cst_45 = arith.constant 1.000000e+00 : f32
    %77 = vector.broadcast %cst_45 : f32 to vector<2x128xf32>
    %78 = arith.addf %72, %77 : vector<2x128xf32>
    %79 = arith.select %74, %78, %72 : vector<2x128xi1>, vector<2x128xf32>
    %c0_46 = arith.constant 0 : index
    %c0_47 = arith.constant 0 : index
    %c0_48 = arith.constant 0 : index
    %c0_49 = arith.constant 0 : index
    %80 = vector.load %arg6[%c0_46, %c0_47, %c0_48, %c0_49] : memref<1x4x2x128xf32, #tpu.memory_space<vmem>>, vector<1x1x2x128xf32>
    %81 = vector.shape_cast %80 : vector<1x1x2x128xf32> to vector<2x128xf32>
    %82 = arith.addf %81, %76 : vector<2x128xf32>
    %c0_50 = arith.constant 0 : index
    %c0_51 = arith.constant 0 : index
    %c0_52 = arith.constant 0 : index
    %c0_53 = arith.constant 0 : index
    %83 = vector.load %arg6[%c0_50, %c0_51, %c0_52, %c0_53] : memref<1x4x2x128xf32, #tpu.memory_space<vmem>>, vector<1x1x2x128xf32>
    %84 = vector.shape_cast %83 : vector<1x1x2x128xf32> to vector<2x128xf32>
    %85 = vector.shape_cast %82 : vector<2x128xf32> to vector<1x1x2x128xf32>
    tpu.vector_store %arg6[%c0_50, %c0_51, %c0_52, %c0_53], %85 {strides = array<i32>} : memref<1x4x2x128xf32, #tpu.memory_space<vmem>>, vector<1x1x2x128xf32>,
    %c0_54 = arith.constant 0 : index
    %c0_55 = arith.constant 0 : index
    %c0_56 = arith.constant 0 : index
    %c0_57 = arith.constant 0 : index
    %86 = vector.load %arg7[%c0_54, %c0_55, %c0_56, %c0_57] : memref<1x4x2x128xf32, #tpu.memory_space<vmem>>, vector<1x1x2x128xf32>
    %87 = vector.shape_cast %86 : vector<1x1x2x128xf32> to vector<2x128xf32>
    %88 = arith.addf %87, %79 : vector<2x128xf32>
    %c0_58 = arith.constant 0 : index
    %c0_59 = arith.constant 0 : index
    %c0_60 = arith.constant 0 : index
    %c0_61 = arith.constant 0 : index
    %89 = vector.load %arg7[%c0_58, %c0_59, %c0_60, %c0_61] : memref<1x4x2x128xf32, #tpu.memory_space<vmem>>, vector<1x1x2x128xf32>
    %90 = vector.shape_cast %89 : vector<1x1x2x128xf32> to vector<2x128xf32>
    %91 = vector.shape_cast %88 : vector<2x128xf32> to vector<1x1x2x128xf32>
    tpu.vector_store %arg7[%c0_58, %c0_59, %c0_60, %c0_61], %91 {strides = array<i32>} : memref<1x4x2x128xf32, #tpu.memory_space<vmem>>, vector<1x1x2x128xf32>,
    %92 = arith.mulf %29, %71 : vector<2x128xf32>
    %c1_i32_62 = arith.constant 1 : i32
    %93 = vector.broadcast %c1_i32_62 : i32 to vector<2x128xi32>
    %94 = arith.cmpi eq, %5, %93 : vector<2x128xi32>
    %cst_63 = arith.constant 0.000000e+00 : f32
    %95 = vector.broadcast %cst_63 : f32 to vector<2x128xf32>
    %96 = arith.select %94, %92, %95 : vector<2x128xi1>, vector<2x128xf32>
    %cst_64 = arith.constant 1.000000e+00 : f32
    %97 = vector.broadcast %cst_64 : f32 to vector<2x128xf32>
    %98 = arith.addf %92, %97 : vector<2x128xf32>
    %99 = arith.select %94, %98, %92 : vector<2x128xi1>, vector<2x128xf32>
    %c0_65 = arith.constant 0 : index
    %c1_66 = arith.constant 1 : index
    %c0_67 = arith.constant 0 : index
    %c0_68 = arith.constant 0 : index
    %100 = vector.load %arg6[%c0_65, %c1_66, %c0_67, %c0_68] : memref<1x4x2x128xf32, #tpu.memory_space<vmem>>, vector<1x1x2x128xf32>
    %101 = vector.shape_cast %100 : vector<1x1x2x128xf32> to vector<2x128xf32>
    %102 = arith.addf %101, %96 : vector<2x128xf32>
    %c0_69 = arith.constant 0 : index
    %c1_70 = arith.constant 1 : index
    %c0_71 = arith.constant 0 : index
    %c0_72 = arith.constant 0 : index
    %103 = vector.load %arg6[%c0_69, %c1_70, %c0_71, %c0_72] : memref<1x4x2x128xf32, #tpu.memory_space<vmem>>, vector<1x1x2x128xf32>
    %104 = vector.shape_cast %103 : vector<1x1x2x128xf32> to vector<2x128xf32>
    %105 = vector.shape_cast %102 : vector<2x128xf32> to vector<1x1x2x128xf32>
    tpu.vector_store %arg6[%c0_69, %c1_70, %c0_71, %c0_72], %105 {strides = array<i32>} : memref<1x4x2x128xf32, #tpu.memory_space<vmem>>, vector<1x1x2x128xf32>,
    %c0_73 = arith.constant 0 : index
    %c1_74 = arith.constant 1 : index
    %c0_75 = arith.constant 0 : index
    %c0_76 = arith.constant 0 : index
    %106 = vector.load %arg7[%c0_73, %c1_74, %c0_75, %c0_76] : memref<1x4x2x128xf32, #tpu.memory_space<vmem>>, vector<1x1x2x128xf32>
    %107 = vector.shape_cast %106 : vector<1x1x2x128xf32> to vector<2x128xf32>
    %108 = arith.addf %107, %99 : vector<2x128xf32>
    %c0_77 = arith.constant 0 : index
    %c1_78 = arith.constant 1 : index
    %c0_79 = arith.constant 0 : index
    %c0_80 = arith.constant 0 : index
    %109 = vector.load %arg7[%c0_77, %c1_78, %c0_79, %c0_80] : memref<1x4x2x128xf32, #tpu.memory_space<vmem>>, vector<1x1x2x128xf32>
    %110 = vector.shape_cast %109 : vector<1x1x2x128xf32> to vector<2x128xf32>
    %111 = vector.shape_cast %108 : vector<2x128xf32> to vector<1x1x2x128xf32>
    tpu.vector_store %arg7[%c0_77, %c1_78, %c0_79, %c0_80], %111 {strides = array<i32>} : memref<1x4x2x128xf32, #tpu.memory_space<vmem>>, vector<1x1x2x128xf32>,
    %112 = arith.mulf %40, %71 : vector<2x128xf32>
    %c2_i32_81 = arith.constant 2 : i32
    %113 = vector.broadcast %c2_i32_81 : i32 to vector<2x128xi32>
    %114 = arith.cmpi eq, %5, %113 : vector<2x128xi32>
    %cst_82 = arith.constant 0.000000e+00 : f32
    %115 = vector.broadcast %cst_82 : f32 to vector<2x128xf32>
    %116 = arith.select %114, %112, %115 : vector<2x128xi1>, vector<2x128xf32>
    %cst_83 = arith.constant 1.000000e+00 : f32
    %117 = vector.broadcast %cst_83 : f32 to vector<2x128xf32>
    %118 = arith.addf %112, %117 : vector<2x128xf32>
    %119 = arith.select %114, %118, %112 : vector<2x128xi1>, vector<2x128xf32>
    %c0_84 = arith.constant 0 : index
    %c2_85 = arith.constant 2 : index
    %c0_86 = arith.constant 0 : index
    %c0_87 = arith.constant 0 : index
    %120 = vector.load %arg6[%c0_84, %c2_85, %c0_86, %c0_87] : memref<1x4x2x128xf32, #tpu.memory_space<vmem>>, vector<1x1x2x128xf32>
    %121 = vector.shape_cast %120 : vector<1x1x2x128xf32> to vector<2x128xf32>
    %122 = arith.addf %121, %116 : vector<2x128xf32>
    %c0_88 = arith.constant 0 : index
    %c2_89 = arith.constant 2 : index
    %c0_90 = arith.constant 0 : index
    %c0_91 = arith.constant 0 : index
    %123 = vector.load %arg6[%c0_88, %c2_89, %c0_90, %c0_91] : memref<1x4x2x128xf32, #tpu.memory_space<vmem>>, vector<1x1x2x128xf32>
    %124 = vector.shape_cast %123 : vector<1x1x2x128xf32> to vector<2x128xf32>
    %125 = vector.shape_cast %122 : vector<2x128xf32> to vector<1x1x2x128xf32>
    tpu.vector_store %arg6[%c0_88, %c2_89, %c0_90, %c0_91], %125 {strides = array<i32>} : memref<1x4x2x128xf32, #tpu.memory_space<vmem>>, vector<1x1x2x128xf32>,
    %c0_92 = arith.constant 0 : index
    %c2_93 = arith.constant 2 : index
    %c0_94 = arith.constant 0 : index
    %c0_95 = arith.constant 0 : index
    %126 = vector.load %arg7[%c0_92, %c2_93, %c0_94, %c0_95] : memref<1x4x2x128xf32, #tpu.memory_space<vmem>>, vector<1x1x2x128xf32>
    %127 = vector.shape_cast %126 : vector<1x1x2x128xf32> to vector<2x128xf32>
    %128 = arith.addf %127, %119 : vector<2x128xf32>
    %c0_96 = arith.constant 0 : index
    %c2_97 = arith.constant 2 : index
    %c0_98 = arith.constant 0 : index
    %c0_99 = arith.constant 0 : index
    %129 = vector.load %arg7[%c0_96, %c2_97, %c0_98, %c0_99] : memref<1x4x2x128xf32, #tpu.memory_space<vmem>>, vector<1x1x2x128xf32>
    %130 = vector.shape_cast %129 : vector<1x1x2x128xf32> to vector<2x128xf32>
    %131 = vector.shape_cast %128 : vector<2x128xf32> to vector<1x1x2x128xf32>
    tpu.vector_store %arg7[%c0_96, %c2_97, %c0_98, %c0_99], %131 {strides = array<i32>} : memref<1x4x2x128xf32, #tpu.memory_space<vmem>>, vector<1x1x2x128xf32>,
    %132 = arith.mulf %51, %71 : vector<2x128xf32>
    %c3_i32_100 = arith.constant 3 : i32
    %133 = vector.broadcast %c3_i32_100 : i32 to vector<2x128xi32>
    %134 = arith.cmpi eq, %5, %133 : vector<2x128xi32>
    %cst_101 = arith.constant 0.000000e+00 : f32
    %135 = vector.broadcast %cst_101 : f32 to vector<2x128xf32>
    %136 = arith.select %134, %132, %135 : vector<2x128xi1>, vector<2x128xf32>
    %cst_102 = arith.constant 1.000000e+00 : f32
    %137 = vector.broadcast %cst_102 : f32 to vector<2x128xf32>
    %138 = arith.addf %132, %137 : vector<2x128xf32>
    %139 = arith.select %134, %138, %132 : vector<2x128xi1>, vector<2x128xf32>
    %c0_103 = arith.constant 0 : index
    %c3_104 = arith.constant 3 : index
    %c0_105 = arith.constant 0 : index
    %c0_106 = arith.constant 0 : index
    %140 = vector.load %arg6[%c0_103, %c3_104, %c0_105, %c0_106] : memref<1x4x2x128xf32, #tpu.memory_space<vmem>>, vector<1x1x2x128xf32>
    %141 = vector.shape_cast %140 : vector<1x1x2x128xf32> to vector<2x128xf32>
    %142 = arith.addf %141, %136 : vector<2x128xf32>
    %c0_107 = arith.constant 0 : index
    %c3_108 = arith.constant 3 : index
    %c0_109 = arith.constant 0 : index
    %c0_110 = arith.constant 0 : index
    %143 = vector.load %arg6[%c0_107, %c3_108, %c0_109, %c0_110] : memref<1x4x2x128xf32, #tpu.memory_space<vmem>>, vector<1x1x2x128xf32>
    %144 = vector.shape_cast %143 : vector<1x1x2x128xf32> to vector<2x128xf32>
    %145 = vector.shape_cast %142 : vector<2x128xf32> to vector<1x1x2x128xf32>
    tpu.vector_store %arg6[%c0_107, %c3_108, %c0_109, %c0_110], %145 {strides = array<i32>} : memref<1x4x2x128xf32, #tpu.memory_space<vmem>>, vector<1x1x2x128xf32>,
    %c0_111 = arith.constant 0 : index
    %c3_112 = arith.constant 3 : index
    %c0_113 = arith.constant 0 : index
    %c0_114 = arith.constant 0 : index
    %146 = vector.load %arg7[%c0_111, %c3_112, %c0_113, %c0_114] : memref<1x4x2x128xf32, #tpu.memory_space<vmem>>, vector<1x1x2x128xf32>
    %147 = vector.shape_cast %146 : vector<1x1x2x128xf32> to vector<2x128xf32>
    %148 = arith.addf %147, %139 : vector<2x128xf32>
    %c0_115 = arith.constant 0 : index
    %c3_116 = arith.constant 3 : index
    %c0_117 = arith.constant 0 : index
    %c0_118 = arith.constant 0 : index
    %149 = vector.load %arg7[%c0_115, %c3_116, %c0_117, %c0_118] : memref<1x4x2x128xf32, #tpu.memory_space<vmem>>, vector<1x1x2x128xf32>
    %150 = vector.shape_cast %149 : vector<1x1x2x128xf32> to vector<2x128xf32>
    %151 = vector.shape_cast %148 : vector<2x128xf32> to vector<1x1x2x128xf32>
    tpu.vector_store %arg7[%c0_115, %c3_116, %c0_117, %c0_118], %151 {strides = array<i32>} : memref<1x4x2x128xf32, #tpu.memory_space<vmem>>, vector<1x1x2x128xf32>,
    return
  }
  func.func @transform_0(%arg0: i32, %arg1: i32, %arg2: i32) -> (i32, i32, i32, i32) {
    %c1_i32 = arith.constant 1 : i32
    %0 = arith.muli %arg1, %c1_i32 : i32
    %1 = arith.addi %0, %arg2 : i32
    %c0_i32 = arith.constant 0 : i32
    %c0_i32_0 = arith.constant 0 : i32
    %c0_i32_1 = arith.constant 0 : i32
    return %arg0, %c0_i32, %1, %c0_i32_0 : i32, i32, i32, i32
  }
  func.func @transform_1(%arg0: i32, %arg1: i32, %arg2: i32) -> (i32, i32, i32) {
    %c1_i32 = arith.constant 1 : i32
    %0 = arith.muli %arg1, %c1_i32 : i32
    %1 = arith.addi %0, %arg2 : i32
    %c0_i32 = arith.constant 0 : i32
    %c0_i32_0 = arith.constant 0 : i32
    return %arg0, %1, %c0_i32 : i32, i32, i32
  }
  func.func @transform_2(%arg0: i32, %arg1: i32, %arg2: i32) -> (i32, i32, i32) {
    %c1_i32 = arith.constant 1 : i32
    %0 = arith.muli %arg0, %c1_i32 : i32
    %1 = arith.addi %0, %arg1 : i32
    %c0_i32 = arith.constant 0 : i32
    %c0_i32_0 = arith.constant 0 : i32
    %c0_i32_1 = arith.constant 0 : i32
    return %1, %c0_i32, %c0_i32_0 : i32, i32, i32
  }
  func.func @transform_3(%arg0: i32, %arg1: i32, %arg2: i32) -> (i32, i32, i32, i32) {
    %c1_i32 = arith.constant 1 : i32
    %0 = arith.muli %arg0, %c1_i32 : i32
    %1 = arith.addi %0, %arg1 : i32
    %c0_i32 = arith.constant 0 : i32
    %c0_i32_0 = arith.constant 0 : i32
    %c0_i32_1 = arith.constant 0 : i32
    %c0_i32_2 = arith.constant 0 : i32
    return %1, %c0_i32, %c0_i32_0, %c0_i32_1 : i32, i32, i32, i32
  }
  func.func @transform_4(%arg0: i32, %arg1: i32, %arg2: i32) -> (i32, i32, i32, i32) {
    %c1_i32 = arith.constant 1 : i32
    %0 = arith.muli %arg0, %c1_i32 : i32
    %1 = arith.addi %0, %arg1 : i32
    %c0_i32 = arith.constant 0 : i32
    %c0_i32_0 = arith.constant 0 : i32
    %c0_i32_1 = arith.constant 0 : i32
    %c0_i32_2 = arith.constant 0 : i32
    return %1, %c0_i32, %c0_i32_0, %c0_i32_1 : i32, i32, i32, i32
  }
}

</mosaic_0001>

<llo_original>
// kernel: tpu_custom_call.1
$region0: #{tpu_custom_call.1}
  #allocation0 [shape = 'u32[]', space=smem, size = 0x4, offset = 0x4, fixed_abs, tag = 'smem constant byte address 0x4 - core index']
  #allocation1 [shape = 'u32[144,128]{1,0:T(1,128)}', space=vmem, size = 0x12000, scoped, tag = 'internal scratch']
  %s0 = inlined_call_operand.hbm [shape: f32[2,4,2,128], index: 0, kind: input, shape index: {}]
  %s1 = inlined_call_operand.hbm [shape: s8[2,2,128], index: 1, kind: input, shape index: {}]
  %s2 = inlined_call_operand.hbm [shape: f32[2,2,128], index: 2, kind: output, shape index: {0}]
  %s3 = inlined_call_operand.hbm [shape: f32[2,4,2,128], index: 3, kind: output, shape index: {1}]
  %s4 = inlined_call_operand.hbm [shape: f32[2,4,2,128], index: 4, kind: output, shape index: {2}]
  %5 = xla_tuple %s2, %s3, %s4
  %s6 = sld [smem:[#allocation0]]
  $region69: #{tpu_custom_call.1} parent=0
    _
  %s8 = ssub.s32 1, %s6
  %s9 = scalar_select 0, %s8, %s6
  $region1: #{tpu_custom_call.1} parent=0
    #allocation2 [shape = 'u8[8192]{0}', space=vmem, size = 0x2000, scoped, tag = 'input window, operand 0']
    #allocation3 [shape = 's32[2]{0}', space=sflag, size = 0x8, scoped, tag = 'scoped memory for tpu_custom_call.1']
    #allocation4 [shape = 's32[2]{0}', space=sflag, size = 0x8, scoped, tag = 'scoped memory for tpu_custom_call.1']
    #allocation5 [shape = 'u8[1024]{0}', space=vmem, size = 0x400, scoped, tag = 'input window, operand 1']
    #allocation6 [shape = 's32[2]{0}', space=sflag, size = 0x8, scoped, tag = 'scoped memory for tpu_custom_call.1']
    #allocation7 [shape = 'u8[2048]{0}', space=vmem, size = 0x800, scoped, tag = 'output window, operand 0']
    #allocation8 [shape = 'u8[8192]{0}', space=vmem, size = 0x2000, scoped, tag = 'output window, operand 1']
    #allocation9 [shape = 's32[2]{0}', space=sflag, size = 0x8, scoped, tag = 'scoped memory for tpu_custom_call.1']
    #allocation10 [shape = 'u8[8192]{0}', space=vmem, size = 0x2000, scoped, tag = 'output window, operand 2']
    %10 = vsyncpa [#allocation3], 0
    %s11 = scalar_lea.sflag [#allocation3], 1
    %12 = vsyncpa %s11, 0
    %13 = vsyncpa [#allocation6], 0
    %s14 = scalar_lea.sflag [#allocation6], 1
    %15 = vsyncpa %s14, 0
    %16 = vsyncpa [#allocation4], 0
    %s17 = scalar_lea.sflag [#allocation4], 1
    %18 = vsyncpa %s17, 0
    %19 = vsyncpa [#allocation9], 0
    %s20 = scalar_lea.sflag [#allocation9], 1
    %21 = vsyncpa %s20, 0
    loop: start=0, step=1, limit=4
    $region2: #{tpu_custom_call.1} parent=1 // loop_pre_header
      _
    $region3: #{tpu_custom_call.1} parent=1 // loop_header
      %s23 = sphi 0, %s27
      %p24 = scmp.ge.s32.totalorder %s23, 4
      %s30 = sphi 0, %s49
      %s31 = sphi 0, %s45
      %s32 = sphi 0, %s41
      %s33 = sphi 0, %s30
      %s34 = sphi 0, %s31
      %s35 = sphi 0, %s32
      %s36 = sphi 0, %s33
      %s37 = sphi 0, %s34
      %s38 = sphi 0, %s35
      %s56 = sphi 0, %s58
      %s59 = sphi 0, %s56
      %s60 = sphi 0, %s59
      %s76 = sphi 0, %s60
      %s86 = sphi 0, %s88
      %s89 = sphi 0, %s86
      %s90 = sphi 0, %s89
      %s106 = sphi 0, %s90
      %s114 = sphi 0, %s116
      %s117 = sphi 0, %s114
      %s118 = sphi 0, %s117
      %s134 = sphi 0, %s118
      %s142 = sphi 0, %s144
      %s145 = sphi 0, %s142
      %s146 = sphi 0, %s145
      %s162 = sphi 0, %s146
      %s170 = sphi 0, %s172
      %s173 = sphi 0, %s170
      %s174 = sphi 0, %s173
      %s190 = sphi 0, %s174
    $region4: #{tpu_custom_call.1} parent=1 // loop_header_branch
      %26 = sbr.rel (%p24) target = $region8
    $region5: #{tpu_custom_call.1} parent=1 // loop_body
      %s28 = ssub.s32 %s23, 1
      %s29 = ssub.s32 %s23, 2
      %s39 = sadd.s32 1, %s32
      %p40 = scmp.ge.s32.totalorder %s39, 1
      %s41 = scalar_select %p40, 0, %s39
      %s42 = sadd.s32 1, %s31
      %s43 = scalar_select %p40, %s42, %s31
      %p44 = scmp.ge.s32.totalorder %s43, 1
      %s45 = scalar_select %p44, 0, %s43
      %s46 = sadd.s32 1, %s30
      %s47 = scalar_select %p44, %s46, %s30
      %p48 = scmp.ge.s32.totalorder %s47, 2
      %s49 = scalar_select %p48, 0, %s47
      %s50 = sadd.s32 %s31, %s32
      %s51 = sadd.s32 %s45, %s41
      %s52 = ssub.s32 %s30, %s49
      %s53 = ssub.s32 %s50, %s51
      %s54 = sor.u32 %s52, %s53
      %p55 = scmp.eq.s32.totalorder %s54, 0
      %s57 = sadd.s32 %s56, 1
      %s58 = scalar_select %p55, %s56, %s57
      %p61 = pneg %p55
      %p62 = scmp.eq.s32.totalorder %s23, 1
      %p63 = por %p61, %p62
      %p64 = scmp.ne.s32.totalorder %s56, %s59
      %p65 = scmp.eq.s32.totalorder %s23, 0
      %p66 = por %p64, %p65
      %p67 = scmp.ne.s32.totalorder %s56, %s59
      %p68 = scmp.eq.s32.totalorder %s28, 1
      %p69 = por %p67, %p68
      %p70 = scmp.ne.s32.totalorder %s59, %s60
      %p71 = scmp.eq.s32.totalorder %s28, 0
      %p72 = por %p70, %p71
      %p73 = scmp.ne.s32.totalorder %s59, %s60
      %p74 = scmp.eq.s32.totalorder %s29, 1
      %p75 = por %p73, %p74
      %p77 = scmp.ne.s32.totalorder %s60, %s76
      %p78 = scmp.eq.s32.totalorder %s29, 0
      %p79 = por %p77, %p78
      %s80 = sadd.s32 %s31, %s32
      %s81 = sadd.s32 %s45, %s41
      %s82 = ssub.s32 %s30, %s49
      %s83 = ssub.s32 %s80, %s81
      %s84 = sor.u32 %s82, %s83
      %p85 = scmp.eq.s32.totalorder %s84, 0
      %s87 = sadd.s32 %s86, 1
      %s88 = scalar_select %p85, %s86, %s87
      %p91 = pneg %p85
      %p92 = scmp.eq.s32.totalorder %s23, 1
      %p93 = por %p91, %p92
      %p94 = scmp.ne.s32.totalorder %s86, %s89
      %p95 = scmp.eq.s32.totalorder %s23, 0
      %p96 = por %p94, %p95
      %p97 = scmp.ne.s32.totalorder %s86, %s89
      %p98 = scmp.eq.s32.totalorder %s28, 1
      %p99 = por %p97, %p98
      %p100 = scmp.ne.s32.totalorder %s89, %s90
      %p101 = scmp.eq.s32.totalorder %s28, 0
      %p102 = por %p100, %p101
      %p103 = scmp.ne.s32.totalorder %s89, %s90
      %p104 = scmp.eq.s32.totalorder %s29, 1
      %p105 = por %p103, %p104
      %p107 = scmp.ne.s32.totalorder %s90, %s106
      %p108 = scmp.eq.s32.totalorder %s29, 0
      %p109 = por %p107, %p108
      %s110 = sadd.s32 %s30, %s31
      %s111 = sadd.s32 %s49, %s45
      %s112 = ssub.s32 %s110, %s111
      %p113 = scmp.eq.s32.totalorder %s112, 0
      %s115 = sadd.s32 %s114, 1
      %s116 = scalar_select %p113, %s114, %s115
      %p119 = pneg %p113
      %p120 = scmp.eq.s32.totalorder %s23, 1
      %p121 = por %p119, %p120
      %p122 = scmp.ne.s32.totalorder %s114, %s117
      %p123 = scmp.eq.s32.totalorder %s23, 0
      %p124 = por %p122, %p123
      %p125 = scmp.ne.s32.totalorder %s114, %s117
      %p126 = scmp.eq.s32.totalorder %s28, 1
      %p127 = por %p125, %p126
      %p128 = scmp.ne.s32.totalorder %s117, %s118
      %p129 = scmp.eq.s32.totalorder %s28, 0
      %p130 = por %p128, %p129
      %p131 = scmp.ne.s32.totalorder %s117, %s118
      %p132 = scmp.eq.s32.totalorder %s29, 1
      %p133 = por %p131, %p132
      %p135 = scmp.ne.s32.totalorder %s118, %s134
      %p136 = scmp.eq.s32.totalorder %s29, 0
      %p137 = por %p135, %p136
      %s138 = sadd.s32 %s30, %s31
      %s139 = sadd.s32 %s49, %s45
      %s140 = ssub.s32 %s138, %s139
      %p141 = scmp.eq.s32.totalorder %s140, 0
      %s143 = sadd.s32 %s142, 1
      %s144 = scalar_select %p141, %s142, %s143
      %p147 = pneg %p141
      %p148 = scmp.eq.s32.totalorder %s23, 1
      %p149 = por %p147, %p148
      %p150 = scmp.ne.s32.totalorder %s142, %s145
      %p151 = scmp.eq.s32.totalorder %s23, 0
      %p152 = por %p150, %p151
      %p153 = scmp.ne.s32.totalorder %s142, %s145
      %p154 = scmp.eq.s32.totalorder %s28, 1
      %p155 = por %p153, %p154
      %p156 = scmp.ne.s32.totalorder %s145, %s146
      %p157 = scmp.eq.s32.totalorder %s28, 0
      %p158 = por %p156, %p157
      %p159 = scmp.ne.s32.totalorder %s145, %s146
      %p160 = scmp.eq.s32.totalorder %s29, 1
      %p161 = por %p159, %p160
      %p163 = scmp.ne.s32.totalorder %s146, %s162
      %p164 = scmp.eq.s32.totalorder %s29, 0
      %p165 = por %p163, %p164
      %s166 = sadd.s32 %s30, %s31
      %s167 = sadd.s32 %s49, %s45
      %s168 = ssub.s32 %s166, %s167
      %p169 = scmp.eq.s32.totalorder %s168, 0
      %s171 = sadd.s32 %s170, 1
      %s172 = scalar_select %p169, %s170, %s171
      %p175 = pneg %p169
      %p176 = scmp.eq.s32.totalorder %s23, 1
      %p177 = por %p175, %p176
      %p178 = scmp.ne.s32.totalorder %s170, %s173
      %p179 = scmp.eq.s32.totalorder %s23, 0
      %p180 = por %p178, %p179
      %p181 = scmp.ne.s32.totalorder %s170, %s173
      %p182 = scmp.eq.s32.totalorder %s28, 1
      %p183 = por %p181, %p182
      %p184 = scmp.ne.s32.totalorder %s173, %s174
      %p185 = scmp.eq.s32.totalorder %s28, 0
      %p186 = por %p184, %p185
      %p187 = scmp.ne.s32.totalorder %s173, %s174
      %p188 = scmp.eq.s32.totalorder %s29, 1
      %p189 = por %p187, %p188
      %p191 = scmp.ne.s32.totalorder %s174, %s190
      %p192 = scmp.eq.s32.totalorder %s29, 0
      %p193 = por %p191, %p192
      %p194 = scmp.le.s32.totalorder 1, %s23
      %p195 = scmp.lt.s32.totalorder %s23, 3
      %p196 = pnand %p194, %p195
      %p197 = pneg %p196
      // Predicated region
      $region9: #{tpu_custom_call.1} parent=5 // pred_check
        _
      $region10: #{tpu_custom_call.1} parent=5 // pred_check_branch
        %199 = sbr.rel (%p196) target = $region12
      $region11: #{tpu_custom_call.1} parent=5 // pred_region
        %s200 = ssub.s32 %s23, 1
      $region12: #{tpu_custom_call.1} parent=5 // pred_fallthru
        _
      %p201 = scmp.lt.s32.totalorder %s23, 2
      // Predicated region
      $region13: #{tpu_custom_call.1} parent=5 // pred_check
        %p202 = pneg %p201
      $region14: #{tpu_custom_call.1} parent=5 // pred_check_branch
        %204 = sbr.rel (%p202) target = $region16
      $region15: #{tpu_custom_call.1} parent=5 // pred_region
        // Predicated region
        $region17: #{tpu_custom_call.1} parent=15 // pred_check
          %p205 = pneg %p66
        $region18: #{tpu_custom_call.1} parent=15 // pred_check_branch
          %207 = sbr.rel (%p205) target = $region20
        $region19: #{tpu_custom_call.1} parent=15 // pred_region
          %s208 = sand.u32 %s56, 1
          %s209 = scalar_lea.sflag [#allocation3], %s208
          %s210 = sand.u32 %s56, 1
          %s211 = smul.addr %s210, 8
          %s212 = scalar_lea.vmem [#allocation2], %s211
          %s213 = sadd.s32 %s31, %s32
          %s215 = ssub.s32 128, 128
          %216 = vsyncadd %s209, %s215
          %s217 = smul.addr %s30, 4
          %s218 = sadd.s32 %s213, %s217
          %s219 = smul.addr %s218, 32
          %s220 = scalar_lea.hbm %s0, %s219
          %s221 = sshll.u32 %s212, 4
          %s222 = int_to_ptr.vmem [resolvable:$true] %s221
          %227 = dma.hbm_to_vmem [thread:$0]  %s220, 128, %s222, %s209, 32, 32, 2
        $region20: #{tpu_custom_call.1} parent=15 // pred_fallthru
          _
        // Predicated region
        $region21: #{tpu_custom_call.1} parent=15 // pred_check
          %p228 = pneg %p96
        $region22: #{tpu_custom_call.1} parent=15 // pred_check_branch
          %230 = sbr.rel (%p228) target = $region24
        $region23: #{tpu_custom_call.1} parent=15 // pred_region
          %s231 = sand.u32 %s86, 1
          %s232 = scalar_lea.sflag [#allocation6], %s231
          %s233 = sand.u32 %s86, 1
          %s234 = scalar_lea.vmem [#allocation5], %s233
          %s235 = sadd.s32 %s31, %s32
          %s237 = ssub.s32 16, 16
          %238 = vsyncadd %s232, %s237
          %s239 = sadd.s32 %s235, %s30
          %s240 = smul.addr %s239, 16
          %s241 = scalar_lea.hbm %s1, %s240
          %s243 = sshll.u32 %s234, 4
          %s244 = int_to_ptr.vmem [resolvable:$true] %s243
          %246 = dma.hbm_to_vmem [thread:$0]  %s241, 16, %s244, %s232
        $region24: #{tpu_custom_call.1} parent=15 // pred_fallthru
          _
      $region16: #{tpu_custom_call.1} parent=5 // pred_fallthru
        _
      %p247 = scmp.le.s32.totalorder 1, %s23
      %p248 = scmp.lt.s32.totalorder %s23, 3
      %p249 = pnand %p247, %p248
      %p250 = pneg %p249
      // Predicated region
      $region25: #{tpu_custom_call.1} parent=5 // pred_check
        _
      $region26: #{tpu_custom_call.1} parent=5 // pred_check_branch
        %252 = sbr.rel (%p249) target = $region28
      $region27: #{tpu_custom_call.1} parent=5 // pred_region
        %s253 = ssub.s32 %s23, 1
        %s254 = sand.u32 %s59, 1
        %s255 = scalar_lea.sflag [#allocation3], %s254
        %s256 = sand.u32 %s59, 1
        %s257 = smul.addr %s256, 8
        %s258 = scalar_lea.vmem [#allocation2], %s257
        // Predicated region
        $region29: #{tpu_custom_call.1} parent=27 // pred_check
          %p259 = pneg %p72
        $region30: #{tpu_custom_call.1} parent=27 // pred_check_branch
          %261 = sbr.rel (%p259) target = $region32
        $region31: #{tpu_custom_call.1} parent=27 // pred_region
          %262 = dma.done %s255, 128
        $region32: #{tpu_custom_call.1} parent=27 // pred_fallthru
          _
        %s263 = sand.u32 %s89, 1
        %s264 = scalar_lea.sflag [#allocation6], %s263
        %s265 = sand.u32 %s89, 1
        %s266 = scalar_lea.vmem [#allocation5], %s265
        // Predicated region
        $region33: #{tpu_custom_call.1} parent=27 // pred_check
          %p267 = pneg %p102
        $region34: #{tpu_custom_call.1} parent=27 // pred_check_branch
          %269 = sbr.rel (%p267) target = $region36
        $region35: #{tpu_custom_call.1} parent=27 // pred_region
          %270 = dma.done %s264, 16
        $region36: #{tpu_custom_call.1} parent=27 // pred_fallthru
          _
        %s271 = sand.u32 %s59, 1
        %s272 = scalar_lea.sflag [#allocation3], %s271
        %s273 = sand.u32 %s59, 1
        %s274 = smul.addr %s273, 8
        %s275 = scalar_lea.vmem [#allocation2], %s274
        %p276 = pneg %p72
        %p277 = pneg %p69
        %s278 = sand.u32 %s89, 1
        %s279 = scalar_lea.sflag [#allocation6], %s278
        %s280 = sand.u32 %s89, 1
        %s281 = scalar_lea.vmem [#allocation5], %s280
        %p282 = pneg %p102
        %p283 = pneg %p99
        %p284 = pneg %p130
        %p285 = pneg %p127
        %s286 = sand.u32 %s117, 1
        %s287 = scalar_lea.sflag [#allocation4], %s286
        %s288 = sand.u32 %s117, 1
        %s289 = smul.addr %s288, 2
        %s290 = scalar_lea.vmem [#allocation7], %s289
        %p291 = pneg %p158
        %p292 = pneg %p155
        %s293 = sand.u32 %s28, 1
        %s294 = scalar_lea.sflag [#allocation9], %s293
        %s295 = sand.u32 %s145, 1
        %s296 = smul.addr %s295, 8
        %s297 = scalar_lea.vmem [#allocation8], %s296
        %p298 = pneg %p186
        %p299 = pneg %p183
        %s300 = sand.u32 %s28, 1
        %s301 = scalar_lea.sflag [#allocation9], %s300
        %s302 = sand.u32 %s173, 1
        %s303 = smul.addr %s302, 8
        %s304 = scalar_lea.vmem [#allocation10], %s303
        %s305 = sadd.s32 %s34, %s35
        %s306 = sadd.s32 %s34, %s35
        %s307 = sadd.s32 %s33, %s34
        %s308 = sadd.s32 %s33, %s34
        %s309 = sadd.s32 %s33, %s34
        %p310 = scmp.eq.s32.totalorder %s35, 0
        // Predicated region
        $region37: #{tpu_custom_call.1} parent=27 // pred_check
          %p311 = pneg %p310
        $region38: #{tpu_custom_call.1} parent=27 // pred_check_branch
          %313 = sbr.rel (%p311) target = $region40
        $region39: #{tpu_custom_call.1} parent=27 // pred_region
          %314 = vst [vmem:[%s290] sm:$0x3] 0.0
          %315 = vst [vmem:[%s297] sm:$0x3] 0.0
          %316 = vst [vmem:[%s297 + $0x2] sm:$0x3] 0.0
          %317 = vst [vmem:[%s297 + $0x4] sm:$0x3] 0.0
          %318 = vst [vmem:[%s297 + $0x6] sm:$0x3] 0.0
          %319 = vst [vmem:[%s304] sm:$0x3] 0.0
          %320 = vst [vmem:[%s304 + $0x2] sm:$0x3] 0.0
          %321 = vst [vmem:[%s304 + $0x4] sm:$0x3] 0.0
          %322 = vst [vmem:[%s304 + $0x6] sm:$0x3] 0.0
        $region40: #{tpu_custom_call.1} parent=27 // pred_fallthru
          _
        %v323 = vld [vmem:[%s266] sm:$0x1]
        %v324 = vunpack.c.0.s8 %v323
        %v325 = vld [vmem:[%s258] sm:$0x3]
        %s326 = scalar_lea.vmem %s258, 2 [#allocation2]
        %v327 = vld [vmem:[%s326] sm:$0x3]
        %v328 = vmax.f32 %v325, %v327
        %s329 = scalar_lea.vmem %s258, 4 [#allocation2]
        %v330 = vld [vmem:[%s329] sm:$0x3]
        %v331 = vmax.f32 %v328, %v330
        %s332 = scalar_lea.vmem %s258, 6 [#allocation2]
        %v333 = vld [vmem:[%s332] sm:$0x3]
        %v334 = vmax.f32 %v331, %v333
        %v335 = vsub.f32 %v325, %v334
        %v336 = vmul.f32 %v335, 1.442695
        %v337 = vpow.pop %v336
        %vm338 = vcmp.eq.s32.totalorder %v324, 0
        %v339 = vsel %vm338, %v335, 0.0
        %v340 = vsub.f32 %v327, %v334
        %v341 = vmul.f32 %v340, 1.442695
        %v342 = vpow.pop %v341
        %v343 = vadd.f32 %v337, %v342
        %vm344 = vcmp.eq.s32.totalorder %v324, 1
        %v345 = vsel %vm344, %v340, 0.0
        %v346 = vadd.f32 %v339, %v345
        %v347 = vsub.f32 %v330, %v334
        %v348 = vmul.f32 %v347, 1.442695
        %v349 = vpow.pop %v348
        %v350 = vadd.f32 %v343, %v349
        %vm351 = vcmp.eq.s32.totalorder %v324, 2
        %v352 = vsel %vm351, %v347, 0.0
        %v353 = vadd.f32 %v346, %v352
        %v354 = vsub.f32 %v333, %v334
        %v355 = vmul.f32 %v354, 1.442695
        %v356 = vpow.pop %v355
        %v357 = vadd.f32 %v350, %v356
        %vm358 = vcmp.eq.s32.totalorder %v324, 3
        %v359 = vsel %vm358, %v354, 0.0
        %v360 = vadd.f32 %v353, %v359
        %v361 = vlog2.pop %v357
        %v362 = vmul.f32 %v361, 0.6931472
        %v363 = vsub.f32 %v362, %v360
        %v364 = vld [vmem:[%s290] sm:$0x3]
        %v365 = vadd.f32 %v364, %v363
        %366 = vst [vmem:[%s290] sm:$0x3] %v365
        %v367 = vrcp.pop %v357
        %v368 = vmul.f32 %v357, %v367
        %v369 = vsub.f32 2.0, %v368
        %v370 = vmul.f32 %v367, %v369
        %v371 = vmul.f32 %v337, %v370
        %v372 = vsel %vm338, %v371, 0.0
        %v373 = vadd.f32 %v371, 1.0
        %v374 = vsel %vm338, %v373, %v371
        %v375 = vld [vmem:[%s297] sm:$0x3]
        %v376 = vadd.f32 %v375, %v372
        %377 = vst [vmem:[%s297] sm:$0x3] %v376
        %v378 = vld [vmem:[%s304] sm:$0x3]
        %v379 = vadd.f32 %v378, %v374
        %380 = vst [vmem:[%s304] sm:$0x3] %v379
        %v381 = vmul.f32 %v342, %v370
        %v382 = vsel %vm344, %v381, 0.0
        %v383 = vadd.f32 %v381, 1.0
        %v384 = vsel %vm344, %v383, %v381
        %s385 = scalar_lea.vmem %s297, 2 [#allocation8]
        %v386 = vld [vmem:[%s385] sm:$0x3]
        %v387 = vadd.f32 %v386, %v382
        %388 = vst [vmem:[%s385] sm:$0x3] %v387
        %s389 = scalar_lea.vmem %s304, 2 [#allocation10]
        %v390 = vld [vmem:[%s389] sm:$0x3]
        %v391 = vadd.f32 %v390, %v384
        %392 = vst [vmem:[%s389] sm:$0x3] %v391
        %v393 = vmul.f32 %v349, %v370
        %v394 = vsel %vm351, %v393, 0.0
        %v395 = vadd.f32 %v393, 1.0
        %v396 = vsel %vm351, %v395, %v393
        %s397 = scalar_lea.vmem %s297, 4 [#allocation8]
        %v398 = vld [vmem:[%s397] sm:$0x3]
        %v399 = vadd.f32 %v398, %v394
        %400 = vst [vmem:[%s397] sm:$0x3] %v399
        %s401 = scalar_lea.vmem %s304, 4 [#allocation10]
        %v402 = vld [vmem:[%s401] sm:$0x3]
        %v403 = vadd.f32 %v402, %v396
        %404 = vst [vmem:[%s401] sm:$0x3] %v403
        %v405 = vmul.f32 %v356, %v370
        %v406 = vsel %vm358, %v405, 0.0
        %v407 = vadd.f32 %v405, 1.0
        %v408 = vsel %vm358, %v407, %v405
        %s409 = scalar_lea.vmem %s297, 6 [#allocation8]
        %v410 = vld [vmem:[%s409] sm:$0x3]
        %v411 = vadd.f32 %v410, %v406
        %412 = vst [vmem:[%s409] sm:$0x3] %v411
        %s413 = scalar_lea.vmem %s304, 6 [#allocation10]
        %v414 = vld [vmem:[%s413] sm:$0x3]
        %v415 = vadd.f32 %v414, %v408
        %416 = vst [vmem:[%s413] sm:$0x3] %v415
        %s417 = sand.u32 %s117, 1
        %s418 = scalar_lea.sflag [#allocation4], %s417
        %s419 = sand.u32 %s117, 1
        %s420 = smul.addr %s419, 2
        %s421 = scalar_lea.vmem [#allocation7], %s420
        %s422 = sand.u32 %s28, 1
        %s423 = scalar_lea.sflag [#allocation9], %s422
        %s424 = sand.u32 %s145, 1
        %s425 = smul.addr %s424, 8
        %s426 = scalar_lea.vmem [#allocation8], %s425
        %s427 = sand.u32 %s28, 1
        %s428 = scalar_lea.sflag [#allocation9], %s427
        %s429 = sand.u32 %s173, 1
        %s430 = smul.addr %s429, 8
        %s431 = scalar_lea.vmem [#allocation10], %s430
        // Predicated region
        $region41: #{tpu_custom_call.1} parent=27 // pred_check
          %p432 = pneg %p127
        $region42: #{tpu_custom_call.1} parent=27 // pred_check_branch
          %434 = sbr.rel (%p432) target = $region44
        $region43: #{tpu_custom_call.1} parent=27 // pred_region
          %s435 = sadd.s32 %s33, %s34
          %s437 = ssub.s32 32, 32
          %438 = vsyncadd %s418, %s437
          %s439 = smul.addr %s435, 32
          %s440 = scalar_lea.hbm %s2, %s439
          %s442 = sshll.u32 %s421, 4
          %s443 = int_to_ptr.vmem [resolvable:$true] %s442
          %445 = dma.vmem_to_hbm [thread:$0]  %s443, 32, %s440, %s418
        $region44: #{tpu_custom_call.1} parent=27 // pred_fallthru
          _
        // Predicated region
        $region45: #{tpu_custom_call.1} parent=27 // pred_check
          %p446 = pneg %p155
        $region46: #{tpu_custom_call.1} parent=27 // pred_check_branch
          %448 = sbr.rel (%p446) target = $region48
        $region47: #{tpu_custom_call.1} parent=27 // pred_region
          %s449 = sadd.s32 %s33, %s34
          %s451 = ssub.s32 128, 128
          %452 = vsyncadd %s423, %s451
          %s453 = smul.addr %s449, 4
          %s454 = smul.addr %s453, 32
          %s455 = scalar_lea.hbm %s3, %s454
          %s456 = sshll.u32 %s426, 4
          %s457 = int_to_ptr.vmem [resolvable:$true] %s456
          %462 = dma.vmem_to_hbm [thread:$0]  %s457, 128, %s455, %s423, 32, 32, 2
        $region48: #{tpu_custom_call.1} parent=27 // pred_fallthru
          _
        // Predicated region
        $region49: #{tpu_custom_call.1} parent=27 // pred_check
          %p463 = pneg %p183
        $region50: #{tpu_custom_call.1} parent=27 // pred_check_branch
          %465 = sbr.rel (%p463) target = $region52
        $region51: #{tpu_custom_call.1} parent=27 // pred_region
          %s466 = sadd.s32 %s33, %s34
          %s468 = ssub.s32 128, 128
          %469 = vsyncadd %s428, %s468
          %s470 = smul.addr %s466, 4
          %s471 = smul.addr %s470, 32
          %s472 = scalar_lea.hbm %s4, %s471
          %s473 = sshll.u32 %s431, 4
          %s474 = int_to_ptr.vmem [resolvable:$true] %s473
          %479 = dma.vmem_to_hbm [thread:$0]  %s474, 128, %s472, %s428, 32, 32, 2
        $region52: #{tpu_custom_call.1} parent=27 // pred_fallthru
          _
      $region28: #{tpu_custom_call.1} parent=5 // pred_fallthru
        _
      %p480 = scmp.le.s32.totalorder 2, %s23
      // Predicated region
      $region53: #{tpu_custom_call.1} parent=5 // pred_check
        %p481 = pneg %p480
      $region54: #{tpu_custom_call.1} parent=5 // pred_check_branch
        %483 = sbr.rel (%p481) target = $region56
      $region55: #{tpu_custom_call.1} parent=5 // pred_region
        %s484 = ssub.s32 %s23, 2
        // Predicated region
        $region57: #{tpu_custom_call.1} parent=55 // pred_check
          %p485 = pneg %p133
        $region58: #{tpu_custom_call.1} parent=55 // pred_check_branch
          %487 = sbr.rel (%p485) target = $region60
        $region59: #{tpu_custom_call.1} parent=55 // pred_region
          %s488 = sand.u32 %s118, 1
          %s489 = scalar_lea.sflag [#allocation4], %s488
          %s490 = sand.u32 %s118, 1
          %s491 = smul.addr %s490, 2
          %s492 = scalar_lea.vmem [#allocation7], %s491
          %493 = dma.done %s489, 32
        $region60: #{tpu_custom_call.1} parent=55 // pred_fallthru
          _
        // Predicated region
        $region61: #{tpu_custom_call.1} parent=55 // pred_check
          %p494 = pneg %p161
        $region62: #{tpu_custom_call.1} parent=55 // pred_check_branch
          %496 = sbr.rel (%p494) target = $region64
        $region63: #{tpu_custom_call.1} parent=55 // pred_region
          %s497 = sand.u32 %s29, 1
          %s498 = scalar_lea.sflag [#allocation9], %s497
          %s499 = sand.u32 %s146, 1
          %s500 = smul.addr %s499, 8
          %s501 = scalar_lea.vmem [#allocation8], %s500
          %502 = dma.done %s498, 128
        $region64: #{tpu_custom_call.1} parent=55 // pred_fallthru
          _
        // Predicated region
        $region65: #{tpu_custom_call.1} parent=55 // pred_check
          %p503 = pneg %p189
        $region66: #{tpu_custom_call.1} parent=55 // pred_check_branch
          %505 = sbr.rel (%p503) target = $region68
        $region67: #{tpu_custom_call.1} parent=55 // pred_region
          %s506 = sand.u32 %s29, 1
          %s507 = scalar_lea.sflag [#allocation9], %s506
          %s508 = sand.u32 %s174, 1
          %s509 = smul.addr %s508, 8
          %s510 = scalar_lea.vmem [#allocation10], %s509
          %511 = dma.done %s507, 128
        $region68: #{tpu_custom_call.1} parent=55 // pred_fallthru
          _
      $region56: #{tpu_custom_call.1} parent=5 // pred_fallthru
        _
    $region6: #{tpu_custom_call.1} parent=1 // loop_footer
      %s27 = sadd.s32 1, %s23
    $region7: #{tpu_custom_call.1} parent=1 // loop_footer_branch
      %22 = sbr.rel target = $region3
    $region8: #{tpu_custom_call.1} parent=1 // loop_exit
      _
    %512 = vsyncpa [#allocation3], 1
    %s513 = scalar_lea.sflag [#allocation3], 1
    %514 = vsyncpa %s513, 1
    %515 = vsyncpa [#allocation6], 1
    %s516 = scalar_lea.sflag [#allocation6], 1
    %517 = vsyncpa %s516, 1
    %518 = vsyncpa [#allocation4], 1
    %s519 = scalar_lea.sflag [#allocation4], 1
    %520 = vsyncpa %s519, 1
    %521 = vsyncpa [#allocation9], 1
    %s522 = scalar_lea.sflag [#allocation9], 1
    %523 = vsyncpa %s522, 1

</llo_original>
